<compile_context>
chip_gen: v7x
topology: tpu7x:2x2x1
jax: 0.10.0
libtpu: 0.0.40
codegen_flags: <defaults>
</compile_context>

<pallas_src>
import functools

import jax
import jax.numpy as jnp
from jax.experimental import pallas as pl
from jax.experimental.pallas import tpu as pltpu


def _round_up(n, m):
    return ((n + m - 1) // m) * m


# ----------------------------------------------------------------------------
# Pallas kernel: fused 3-layer MLP (tanh on first two layers)
# ----------------------------------------------------------------------------
def matrixnet_kernel(x_ref, w1_ref, b1_ref, w2_ref, b2_ref, w3_ref, b3_ref,
                     out_ref):
    cdt = w1_ref.dtype  # matmul operand dtype (f32 default; bf16 optional)
    h = jnp.tanh(
        jnp.dot(x_ref[...], w1_ref[...], preferred_element_type=jnp.float32)
        + b1_ref[...])
    h = jnp.tanh(
        jnp.dot(h.astype(cdt), w2_ref[...],
                preferred_element_type=jnp.float32)
        + b2_ref[...])
    out = (jnp.dot(h.astype(cdt), w3_ref[...],
                   preferred_element_type=jnp.float32)
           + b3_ref[...])
    out_ref[...] = out.astype(out_ref.dtype)


# ----------------------------------------------------------------------------
# One-time parameter preparation (hoisted out of the per-call path):
#   * transpose weights (out,in) -> (in,out)
#   * biases as (1, dim) rows (kept f32; accumulation/bias/tanh stay f32)
#   * zero-pad the last layer to a 128-lane output for lane-dense stores
# ----------------------------------------------------------------------------
def prepare_params(params, compute_dtype=jnp.float32):
    w1, b1, w2, b2, w3, b3 = params
    output_dim, hidden_dim = w3.shape
    out_pad = _round_up(output_dim, 128)

    w1t = w1.T.astype(compute_dtype)
    w2t = w2.T.astype(compute_dtype)
    w3t = jnp.zeros((hidden_dim, out_pad), compute_dtype)
    w3t = w3t.at[:, :output_dim].set(w3.T.astype(compute_dtype))

    b1r = b1[None, :].astype(jnp.float32)
    b2r = b2[None, :].astype(jnp.float32)
    b3r = jnp.zeros((1, out_pad), jnp.float32).at[:, :output_dim].set(
        b3.astype(jnp.float32))

    return (w1t, b1r, w2t, b2r, w3t, b3r), int(output_dim)


# ----------------------------------------------------------------------------
# Forward pass (jit-compiled wrapper around a single pallas_call)
# ----------------------------------------------------------------------------
@functools.partial(jax.jit,
                   static_argnames=("output_dim", "matrix_shape", "block_b"))
def matrixnet_forward(x, kparams, *, output_dim, matrix_shape=(2, 2),
                      block_b=1024):
    """x: (B, input_dim). kparams: output of prepare_params. -> (B, *shape)."""
    w1t, b1r, w2t, b2r, w3t, b3r = kparams
    B, input_dim = x.shape
    hidden_dim = w1t.shape[1]
    out_pad = w3t.shape[1]

    x = x.astype(w1t.dtype)

    # --- batch tiling (trace-time / static) ---------------------------------
    blk = block_b
    if B <= blk:
        if B >= 16:
            # Split into 2 tiles so the "parallel" grid axis can feed both
            # TensorCores on v7x (extra step is negligible on v5e/v6e).
            blk = _round_up(pl.cdiv(B, 2), 8)
        else:
            blk = _round_up(max(B, 8), 8)
    b_pad = _round_up(B, blk)
    if b_pad != B:
        x = jnp.pad(x, ((0, b_pad - B), (0, 0)))
    grid = (b_pad // blk,)

    flat = pl.pallas_call(
        matrixnet_kernel,
        out_shape=jax.ShapeDtypeStruct((b_pad, out_pad), jnp.float32),
        grid_spec=pltpu.PrefetchScalarGridSpec(
            num_scalar_prefetch=0,
            grid=grid,
            in_specs=[
                pl.BlockSpec((blk, input_dim), lambda i: (i, 0)),
                # Weights/biases: constant block index -> VMEM-resident
                # across grid steps (no re-DMA); only a few KB total.
                pl.BlockSpec((input_dim, hidden_dim), lambda i: (0, 0)),
                pl.BlockSpec((1, hidden_dim), lambda i: (0, 0)),
                pl.BlockSpec((hidden_dim, hidden_dim), lambda i: (0, 0)),
                pl.BlockSpec((1, hidden_dim), lambda i: (0, 0)),
                pl.BlockSpec((hidden_dim, out_pad), lambda i: (0, 0)),
                pl.BlockSpec((1, out_pad), lambda i: (0, 0)),
            ],
            out_specs=pl.BlockSpec((blk, out_pad), lambda i: (i, 0)),
        ),
        compiler_params=pltpu.CompilerParams(
            dimension_semantics=("parallel",)),
    )(x, w1t, b1r, w2t, b2r, w3t, b3r)

    # Strip batch/lane padding, then MatrixNet.forward's view(-1, *shape).
    return flat[:B, :output_dim].reshape(-1, *matrix_shape)


# ----------------------------------------------------------------------------
# Deterministic parameter construction (mirrors torch MLP shapes:
#   linear1: (hidden, input), linear2: (hidden, hidden), linear3: (out, hidden)
#   weights orthogonal-initialized, biases small random)
# ----------------------------------------------------------------------------
def _orthogonal(key, shape, gain=1.0):
    rows, cols = shape
    a = jax.random.normal(key, (max(rows, cols), min(rows, cols)),
                          dtype=jnp.float32)
    q, r = jnp.linalg.qr(a)
    q = q * jnp.sign(jnp.diagonal(r))[None, :]
    if rows < cols:
        q = q.T
    return (gain * q[:rows, :cols]).astype(jnp.float32)


def init_matrixnet_params(key, input_dim, hidden_dim, output_dim,
                          init_gain=1.0):
    k1, k2, k3, kb1, kb2, kb3 = jax.random.split(key, 6)
    w1 = _orthogonal(k1, (hidden_dim, input_dim), init_gain)
    w2 = _orthogonal(k2, (hidden_dim, hidden_dim), init_gain)
    w3 = _orthogonal(k3, (output_dim, hidden_dim), init_gain)
    b1 = 0.01 * jax.random.normal(kb1, (hidden_dim,), dtype=jnp.float32)
    b2 = 0.01 * jax.random.normal(kb2, (hidden_dim,), dtype=jnp.float32)
    b3 = 0.01 * jax.random.normal(kb3, (output_dim,), dtype=jnp.float32)
    return (w1, b1, w2, b2, w3, b3)


# ----------------------------------------------------------------------------
# Pure-JAX reference (mirrors torch MatrixNet.forward)
# ----------------------------------------------------------------------------
def matrixnet_ref(x, params, matrix_shape=(2, 2)):
    w1, b1, w2, b2, w3, b3 = params
    h = jnp.tanh(x @ w1.T + b1)
    h = jnp.tanh(h @ w2.T + b2)
    out = h @ w3.T + b3
    return out.reshape(-1, *matrix_shape)


if __name__ == "__main__":
    # MatrixNet(input_dim=4, hidden_dim=32, output_dim=4, shape=(2, 2))
    input_dim, hidden_dim, output_dim = 4, 32, 4
    matrix_shape = (2, 2)

    key = jax.random.PRNGKey(0)
    kx, kx2, kp = jax.random.split(key, 3)
    params = init_matrixnet_params(kp, input_dim, hidden_dim, output_dim)
    kparams, odim = prepare_params(params)  # default: f32 compute
    # TODO(synk): on v6e/v7x, pass compute_dtype=jnp.bfloat16 to halve
    # activation/weight HBM traffic (accumulation stays f32 in the kernel).

    # Small batch (single tile).
    x = jax.random.normal(kx, (8, input_dim), dtype=jnp.float32)
    out = jax.block_until_ready(
        matrixnet_forward(x, kparams, output_dim=odim,
                          matrix_shape=matrix_shape))
    ref = matrixnet_ref(x, params, matrix_shape=matrix_shape)
    assert out.shape == (8, *matrix_shape), out.shape
    assert jnp.allclose(out, ref, atol=1e-5, rtol=1e-5), \
        float(jnp.max(jnp.abs(out - ref)))

    # Non-multiple batch: exercises zero-padding + multi-step grid (length 2).
    x2 = jax.random.normal(kx2, (300, input_dim), dtype=jnp.float32)
    out2 = jax.block_until_ready(
        matrixnet_forward(x2, kparams, output_dim=odim,
                          matrix_shape=matrix_shape))
    ref2 = matrixnet_ref(x2, params, matrix_shape=matrix_shape)
    assert out2.shape == (300, *matrix_shape), out2.shape
    assert jnp.allclose(out2, ref2, atol=1e-5, rtol=1e-5), \
        float(jnp.max(jnp.abs(out2 - ref2)))

    print("KERNEL_OK")
</pallas_src>

<mosaic_0001>
module attributes {stable_mosaic.version = 11 : i64} {
  func.func @matrixnet_kernel(%arg0: i32, %arg1: memref<8x4xf32, #tpu.memory_space<vmem>>, %arg2: memref<4x32xf32, #tpu.memory_space<vmem>>, %arg3: memref<1x32xf32, #tpu.memory_space<vmem>>, %arg4: memref<32x32xf32, #tpu.memory_space<vmem>>, %arg5: memref<1x32xf32, #tpu.memory_space<vmem>>, %arg6: memref<32x128xf32, #tpu.memory_space<vmem>>, %arg7: memref<1x128xf32, #tpu.memory_space<vmem>>, %arg8: memref<8x128xf32, #tpu.memory_space<vmem>>) attributes {dimension_semantics = [#tpu.dimension_semantics<parallel>], iteration_bounds = array<i64: 1>, scalar_prefetch = 0 : i64, scratch_operands = 0 : i64, tpu.core_type = #tpu.core_type<tc>, window_params = [{transform_indices = @transform_0, window_bounds = array<i64: 8, 4>}, {pipeline_mode = #tpu.pipeline_mode<synchronous>, transform_indices = @transform_1, window_bounds = array<i64: 4, 32>}, {pipeline_mode = #tpu.pipeline_mode<synchronous>, transform_indices = @transform_2, window_bounds = array<i64: 1, 32>}, {pipeline_mode = #tpu.pipeline_mode<synchronous>, transform_indices = @transform_3, window_bounds = array<i64: 32, 32>}, {pipeline_mode = #tpu.pipeline_mode<synchronous>, transform_indices = @transform_4, window_bounds = array<i64: 1, 32>}, {pipeline_mode = #tpu.pipeline_mode<synchronous>, transform_indices = @transform_5, window_bounds = array<i64: 32, 128>}, {pipeline_mode = #tpu.pipeline_mode<synchronous>, transform_indices = @transform_6, window_bounds = array<i64: 1, 128>}, {transform_indices = @transform_7, window_bounds = array<i64: 8, 128>}]} {
    %c0 = arith.constant 0 : index
    %c0_0 = arith.constant 0 : index
    %0 = vector.load %arg1[%c0, %c0_0] : memref<8x4xf32, #tpu.memory_space<vmem>>, vector<8x4xf32>
    %c0_1 = arith.constant 0 : index
    %c0_2 = arith.constant 0 : index
    %1 = vector.load %arg2[%c0_1, %c0_2] : memref<4x32xf32, #tpu.memory_space<vmem>>, vector<4x32xf32>
    %cst = arith.constant dense<0.000000e+00> : vector<8x32xf32>
    %2 = tpu.matmul %0, %1, %cst {dimension_numbers = #tpu.dot_dimension_numbers<[1], [0], [0], [1], [0, 0, 1, 1], [], []>} : vector<8x4xf32>, vector<4x32xf32>, vector<8x32xf32> -> vector<8x32xf32>
    %c0_3 = arith.constant 0 : index
    %c0_4 = arith.constant 0 : index
    %3 = vector.load %arg3[%c0_3, %c0_4] : memref<1x32xf32, #tpu.memory_space<vmem>>, vector<1x32xf32>
    %4 = vector.broadcast %3 : vector<1x32xf32> to vector<8x32xf32>
    %5 = arith.addf %2, %4 : vector<8x32xf32>
    %6 = math.tanh %5 : vector<8x32xf32>
    %c0_5 = arith.constant 0 : index
    %c0_6 = arith.constant 0 : index
    %7 = vector.load %arg4[%c0_5, %c0_6] : memref<32x32xf32, #tpu.memory_space<vmem>>, vector<32x32xf32>
    %cst_7 = arith.constant dense<0.000000e+00> : vector<8x32xf32>
    %8 = tpu.matmul %6, %7, %cst_7 {dimension_numbers = #tpu.dot_dimension_numbers<[1], [0], [0], [1], [0, 0, 1, 1], [], []>} : vector<8x32xf32>, vector<32x32xf32>, vector<8x32xf32> -> vector<8x32xf32>
    %c0_8 = arith.constant 0 : index
    %c0_9 = arith.constant 0 : index
    %9 = vector.load %arg5[%c0_8, %c0_9] : memref<1x32xf32, #tpu.memory_space<vmem>>, vector<1x32xf32>
    %10 = vector.broadcast %9 : vector<1x32xf32> to vector<8x32xf32>
    %11 = arith.addf %8, %10 : vector<8x32xf32>
    %12 = math.tanh %11 : vector<8x32xf32>
    %c0_10 = arith.constant 0 : index
    %c0_11 = arith.constant 0 : index
    %13 = vector.load %arg6[%c0_10, %c0_11] : memref<32x128xf32, #tpu.memory_space<vmem>>, vector<32x128xf32>
    %cst_12 = arith.constant dense<0.000000e+00> : vector<8x128xf32>
    %14 = tpu.matmul %12, %13, %cst_12 {dimension_numbers = #tpu.dot_dimension_numbers<[1], [0], [0], [1], [0, 0, 1, 1], [], []>} : vector<8x32xf32>, vector<32x128xf32>, vector<8x128xf32> -> vector<8x128xf32>
    %c0_13 = arith.constant 0 : index
    %c0_14 = arith.constant 0 : index
    %15 = vector.load %arg7[%c0_13, %c0_14] : memref<1x128xf32, #tpu.memory_space<vmem>>, vector<1x128xf32>
    %16 = vector.broadcast %15 : vector<1x128xf32> to vector<8x128xf32>
    %17 = arith.addf %14, %16 : vector<8x128xf32>
    %c0_15 = arith.constant 0 : index
    %c0_16 = arith.constant 0 : index
    %18 = vector.load %arg8[%c0_15, %c0_16] : memref<8x128xf32, #tpu.memory_space<vmem>>, vector<8x128xf32>
    tpu.vector_store %arg8[%c0_15, %c0_16], %17 {strides = array<i32>} : memref<8x128xf32, #tpu.memory_space<vmem>>, vector<8x128xf32>,
    return
  }
  func.func @transform_0(%arg0: i32) -> (i32, i32) {
    %c0_i32 = arith.constant 0 : i32
    %c0_i32_0 = arith.constant 0 : i32
    return %arg0, %c0_i32 : i32, i32
  }
  func.func @transform_1(%arg0: i32) -> (i32, i32) {
    %c0_i32 = arith.constant 0 : i32
    %c0_i32_0 = arith.constant 0 : i32
    %c0_i32_1 = arith.constant 0 : i32
    return %c0_i32, %c0_i32_0 : i32, i32
  }
  func.func @transform_2(%arg0: i32) -> (i32, i32) {
    %c0_i32 = arith.constant 0 : i32
    %c0_i32_0 = arith.constant 0 : i32
    %c0_i32_1 = arith.constant 0 : i32
    return %c0_i32, %c0_i32_0 : i32, i32
  }
  func.func @transform_3(%arg0: i32) -> (i32, i32) {
    %c0_i32 = arith.constant 0 : i32
    %c0_i32_0 = arith.constant 0 : i32
    %c0_i32_1 = arith.constant 0 : i32
    return %c0_i32, %c0_i32_0 : i32, i32
  }
  func.func @transform_4(%arg0: i32) -> (i32, i32) {
    %c0_i32 = arith.constant 0 : i32
    %c0_i32_0 = arith.constant 0 : i32
    %c0_i32_1 = arith.constant 0 : i32
    return %c0_i32, %c0_i32_0 : i32, i32
  }
  func.func @transform_5(%arg0: i32) -> (i32, i32) {
    %c0_i32 = arith.constant 0 : i32
    %c0_i32_0 = arith.constant 0 : i32
    %c0_i32_1 = arith.constant 0 : i32
    return %c0_i32, %c0_i32_0 : i32, i32
  }
  func.func @transform_6(%arg0: i32) -> (i32, i32) {
    %c0_i32 = arith.constant 0 : i32
    %c0_i32_0 = arith.constant 0 : i32
    %c0_i32_1 = arith.constant 0 : i32
    return %c0_i32, %c0_i32_0 : i32, i32
  }
  func.func @transform_7(%arg0: i32) -> (i32, i32) {
    %c0_i32 = arith.constant 0 : i32
    %c0_i32_0 = arith.constant 0 : i32
    return %arg0, %c0_i32 : i32, i32
  }
}

</mosaic_0001>

<llo_original>
// kernel: matrixnet_forward.1
$region0: #{matrixnet_forward.1}
  #allocation0 [shape = 'u32[]', space=smem, size = 0x4, offset = 0x4, fixed_abs, tag = 'smem constant byte address 0x4 - core index']
  #allocation1 [shape = 'u32[144,128]{1,0:T(1,128)}', space=vmem, size = 0x12000, scoped, tag = 'internal scratch']
  %s0 = inlined_call_operand.vmem [shape: f32[8,4], index: 0, kind: input, shape index: {}]
  %s1 = inlined_call_operand.vmem [shape: f32[4,32], index: 1, kind: input, shape index: {}]
  %s2 = inlined_call_operand.vmem [shape: f32[1,32], index: 2, kind: input, shape index: {}]
  %s3 = inlined_call_operand.hbm [shape: f32[32,32], index: 3, kind: input, shape index: {}]
  %s4 = inlined_call_operand.vmem [shape: f32[1,32], index: 4, kind: input, shape index: {}]
  %s5 = inlined_call_operand.hbm [shape: f32[32,128], index: 5, kind: input, shape index: {}]
  %s6 = inlined_call_operand.vmem [shape: f32[1,128], index: 6, kind: input, shape index: {}]
  %s7 = inlined_call_operand.vmem [shape: f32[8,128], index: 7, kind: output, shape index: {}]
  %s8 = sld [smem:[#allocation0]]
  $region46: #{matrixnet_forward.1} parent=0
    _
  %s10 = ssub.s32 1, %s8
  %s11 = scalar_select 0, %s10, %s8
  $region1: #{matrixnet_forward.1} parent=0
    #allocation2 [shape = 'u8[16384]{0}', space=vmem, size = 0x4000, scoped, tag = 'input window, operand 3, single buffered']
    #allocation3 [shape = 's32[1]{0}', space=sflag, size = 0x4, scoped, tag = 'scoped memory for matrixnet_forward.1']
    #allocation4 [shape = 'u8[16384]{0}', space=vmem, size = 0x4000, scoped, tag = 'input window, operand 5, single buffered']
    #allocation5 [shape = 's32[1]{0}', space=sflag, size = 0x4, scoped, tag = 'scoped memory for matrixnet_forward.1']
    %12 = vsyncpa [#allocation3], 0
    %13 = vsyncpa [#allocation5], 0
    // Predicated region
    $region2: #{matrixnet_forward.1} parent=1 // pred_check
      _
    $region3: #{matrixnet_forward.1} parent=1 // pred_check_branch
      %15 = sbr.rel (0) target = $region5
    $region4: #{matrixnet_forward.1} parent=1 // pred_region
      _
    $region5: #{matrixnet_forward.1} parent=1 // pred_fallthru
      _
    // Predicated region
    $region6: #{matrixnet_forward.1} parent=1 // pred_check
      _
    $region7: #{matrixnet_forward.1} parent=1 // pred_check_branch
      %17 = sbr.rel (0) target = $region9
    $region8: #{matrixnet_forward.1} parent=1 // pred_region
      _
    $region9: #{matrixnet_forward.1} parent=1 // pred_fallthru
      _
    // Predicated region
    $region10: #{matrixnet_forward.1} parent=1 // pred_check
      _
    $region11: #{matrixnet_forward.1} parent=1 // pred_check_branch
      %19 = sbr.rel (0) target = $region13
    $region12: #{matrixnet_forward.1} parent=1 // pred_region
      _
    $region13: #{matrixnet_forward.1} parent=1 // pred_fallthru
      _
    // Predicated region
    $region14: #{matrixnet_forward.1} parent=1 // pred_check
      _
    $region15: #{matrixnet_forward.1} parent=1 // pred_check_branch
      %21 = sbr.rel (0) target = $region17
    $region16: #{matrixnet_forward.1} parent=1 // pred_region
      %s23 = ssub.s32 512, 512
      %24 = vsyncadd [#allocation3], %s23
      %s25 = sshll.u32 [#allocation2], 4
      %s26 = int_to_ptr.vmem [resolvable:$true] %s25
      %31 = dma.hbm_to_vmem [thread:$0]  %s3, 512, %s26, [#allocation3], 128, 128, 8
    $region17: #{matrixnet_forward.1} parent=1 // pred_fallthru
      _
    // Predicated region
    $region18: #{matrixnet_forward.1} parent=1 // pred_check
      _
    $region19: #{matrixnet_forward.1} parent=1 // pred_check_branch
      %33 = sbr.rel (0) target = $region21
    $region20: #{matrixnet_forward.1} parent=1 // pred_region
      _
    $region21: #{matrixnet_forward.1} parent=1 // pred_fallthru
      _
    // Predicated region
    $region22: #{matrixnet_forward.1} parent=1 // pred_check
      _
    $region23: #{matrixnet_forward.1} parent=1 // pred_check_branch
      %35 = sbr.rel (0) target = $region25
    $region24: #{matrixnet_forward.1} parent=1 // pred_region
      %s37 = ssub.s32 512, 512
      %38 = vsyncadd [#allocation5], %s37
      %s39 = sshll.u32 [#allocation4], 4
      %s40 = int_to_ptr.vmem [resolvable:$true] %s39
      %45 = dma.hbm_to_vmem [thread:$0]  %s5, 512, %s40, [#allocation5], 128, 128, 8
    $region25: #{matrixnet_forward.1} parent=1 // pred_fallthru
      _
    // Predicated region
    $region26: #{matrixnet_forward.1} parent=1 // pred_check
      _
    $region27: #{matrixnet_forward.1} parent=1 // pred_check_branch
      %47 = sbr.rel (0) target = $region29
    $region28: #{matrixnet_forward.1} parent=1 // pred_region
      _
    $region29: #{matrixnet_forward.1} parent=1 // pred_fallthru
      _
    // Predicated region
    $region30: #{matrixnet_forward.1} parent=1 // pred_check
      _
    $region31: #{matrixnet_forward.1} parent=1 // pred_check_branch
      %49 = sbr.rel (0) target = $region33
    $region32: #{matrixnet_forward.1} parent=1 // pred_region
      %50 = dma.done [#allocation3], 512
    $region33: #{matrixnet_forward.1} parent=1 // pred_fallthru
      _
    // Predicated region
    $region34: #{matrixnet_forward.1} parent=1 // pred_check
      _
    $region35: #{matrixnet_forward.1} parent=1 // pred_check_branch
      %52 = sbr.rel (0) target = $region37
    $region36: #{matrixnet_forward.1} parent=1 // pred_region
      %53 = dma.done [#allocation5], 512
    $region37: #{matrixnet_forward.1} parent=1 // pred_fallthru
      _
    %v54 = vld [vmem:[%s0] sm:$0xff]
    %v55 = vld [vmem:[%s1] sm:$0xf]
    %v56 = vld [vmem:[%s2] sm:$0x1]
    %v58 = vlaneseq
    %v59 = vshrl.u32 %v58, 7
    %v60 = vsub.s32 0, %v59
    %v61 = vrot.slane %v56, %v60
    %vm63 = vcmask 31744
    %v65 = vsel %vm63, %v54, 0
    %vm67 = vcmask 1043456
    %v69 = vsel %vm67, %v55, 0
    %71 = vmatprep.subr.mxu0 0.0
    %72 = vmatpush1.msra.mxu0 %v69
    %73 = vmatprep.subr.mxu0 0.0
    %74 = vmatpush1.msra.mxu0 0.0
    %75 = vmatprep.subr.mxu0 0.0
    %76 = vmatpush1.msra.mxu0 0.0
    %77 = vmatprep.subr.mxu0 0.0
    %78 = vmatpush1.msra.mxu0 0.0
    %79 = vmatprep.subr.mxu0 0.0
    %80 = vmatpush1.msra.mxu0 0.0
    %81 = vmatprep.subr.mxu0 0.0
    %82 = vmatpush1.msra.mxu0 0.0
    %83 = vmatprep.subr.mxu0 0.0
    %84 = vmatpush1.msra.mxu0 0.0
    %85 = vmatprep.subr.mxu0 0.0
    %86 = vmatpush1.msra.mxu0 0.0
    %87 = vmatprep.subr.mxu0 0.0
    %88 = vmatpush1.msra.mxu0 0.0
    %89 = vmatprep.subr.mxu0 0.0
    %90 = vmatpush1.msra.mxu0 0.0
    %91 = vmatprep.subr.mxu0 0.0
    %92 = vmatpush1.msra.mxu0 0.0
    %93 = vmatprep.subr.mxu0 0.0
    %94 = vmatpush1.msra.mxu0 0.0
    %95 = vmatprep.subr.mxu0 0.0
    %96 = vmatpush1.msra.mxu0 0.0
    %97 = vmatprep.subr.mxu0 0.0
    %98 = vmatpush1.msra.mxu0 0.0
    %99 = vmatprep.subr.mxu0 0.0
    %100 = vmatpush1.msra.mxu0 0.0
    %101 = vmatprep.subr.mxu0 0.0
    %102 = vmatpush1.msra.mxu0 0.0
    %103 = vmatprep.subr.mxu0 0.0
    %104 = vmatpush1.msra.mxu0 0.0
    %105 = vmatprep.subr.mxu0 0.0
    %106 = vmatpush1.msra.mxu0 0.0
    %107 = vmatprep.subr.mxu0 0.0
    %108 = vmatpush1.msra.mxu0 0.0
    %109 = vmatprep.subr.mxu0 0.0
    %110 = vmatpush1.msra.mxu0 0.0
    %111 = vmatprep.subr.mxu0 0.0
    %112 = vmatpush1.msra.mxu0 0.0
    %113 = vmatprep.subr.mxu0 0.0
    %114 = vmatpush1.msra.mxu0 0.0
    %115 = vmatprep.subr.mxu0 0.0
    %116 = vmatpush1.msra.mxu0 0.0
    %117 = vmatprep.subr.mxu0 0.0
    %118 = vmatpush1.msra.mxu0 0.0
    %119 = vmatprep.subr.mxu0 0.0
    %120 = vmatpush1.msra.mxu0 0.0
    %121 = vmatprep.subr.mxu0 0.0
    %122 = vmatpush1.msra.mxu0 0.0
    %123 = vmatprep.subr.mxu0 0.0
    %124 = vmatpush1.msra.mxu0 0.0
    %125 = vmatprep.subr.mxu0 0.0
    %126 = vmatpush1.msra.mxu0 0.0
    %127 = vmatprep.subr.mxu0 0.0
    %128 = vmatpush1.msra.mxu0 0.0
    %129 = vmatprep.subr.mxu0 0.0
    %130 = vmatpush1.msra.mxu0 0.0
    %131 = vmatprep.subr.mxu0 0.0
    %132 = vmatpush1.msra.mxu0 0.0
    %133 = vmatprep.subr.mxu0 0.0
    %134 = vmatpush1.msra.mxu0 0.0
    %135 = vmatprep.mubr.f32.mxu0 0.0
    %136 = vmatmul.mubr.f32.gmra.mrb[0].mxu0 %v65
    %v137 = vpop.f32.mrb[0].mxu0
    %v138 = vadd.f32 %v61, %v137
    %v139 = vpop.f32.mrb[0].mxu0
    %140 = vdwg.mxu0
    %v141 = vtanh.pop %v138
    %v142 = vld [vmem:[#allocation2] sm:$0xff]
    %v143 = vld [vmem:[#allocation2 + $0x8] sm:$0xff]
    %v144 = vld [vmem:[#allocation2 + $0x10] sm:$0xff]
    %v145 = vld [vmem:[#allocation2 + $0x18] sm:$0xff]
    %v146 = vld [vmem:[%s4] sm:$0x1]
    %v148 = vlaneseq
    %v149 = vshrl.u32 %v148, 7
    %v150 = vsub.s32 0, %v149
    %v151 = vrot.slane %v146, %v150
    %vm153 = vcmask 261120
    %v155 = vsel %vm153, %v141, 0
    %157 = vmatprep.subr.mxu0 0.0
    %158 = vmatpush1.msra.mxu0 %v142
    %159 = vmatprep.subr.mxu0 0.0
    %160 = vmatpush1.msra.mxu0 %v143
    %161 = vmatprep.subr.mxu0 0.0
    %162 = vmatpush1.msra.mxu0 %v144
    %163 = vmatprep.subr.mxu0 0.0
    %164 = vmatpush1.msra.mxu0 %v145
    %165 = vmatprep.subr.mxu0 0.0
    %166 = vmatpush1.msra.mxu0 0.0
    %167 = vmatprep.subr.mxu0 0.0
    %168 = vmatpush1.msra.mxu0 0.0
    %169 = vmatprep.subr.mxu0 0.0
    %170 = vmatpush1.msra.mxu0 0.0
    %171 = vmatprep.subr.mxu0 0.0
    %172 = vmatpush1.msra.mxu0 0.0
    %173 = vmatprep.subr.mxu0 0.0
    %174 = vmatpush1.msra.mxu0 0.0
    %175 = vmatprep.subr.mxu0 0.0
    %176 = vmatpush1.msra.mxu0 0.0
    %177 = vmatprep.subr.mxu0 0.0
    %178 = vmatpush1.msra.mxu0 0.0
    %179 = vmatprep.subr.mxu0 0.0
    %180 = vmatpush1.msra.mxu0 0.0
    %181 = vmatprep.subr.mxu0 0.0
    %182 = vmatpush1.msra.mxu0 0.0
    %183 = vmatprep.subr.mxu0 0.0
    %184 = vmatpush1.msra.mxu0 0.0
    %185 = vmatprep.subr.mxu0 0.0
    %186 = vmatpush1.msra.mxu0 0.0
    %187 = vmatprep.subr.mxu0 0.0
    %188 = vmatpush1.msra.mxu0 0.0
    %189 = vmatprep.subr.mxu0 0.0
    %190 = vmatpush1.msra.mxu0 0.0
    %191 = vmatprep.subr.mxu0 0.0
    %192 = vmatpush1.msra.mxu0 0.0
    %193 = vmatprep.subr.mxu0 0.0
    %194 = vmatpush1.msra.mxu0 0.0
    %195 = vmatprep.subr.mxu0 0.0
    %196 = vmatpush1.msra.mxu0 0.0
    %197 = vmatprep.subr.mxu0 0.0
    %198 = vmatpush1.msra.mxu0 0.0
    %199 = vmatprep.subr.mxu0 0.0
    %200 = vmatpush1.msra.mxu0 0.0
    %201 = vmatprep.subr.mxu0 0.0
    %202 = vmatpush1.msra.mxu0 0.0
    %203 = vmatprep.subr.mxu0 0.0
    %204 = vmatpush1.msra.mxu0 0.0
    %205 = vmatprep.subr.mxu0 0.0
    %206 = vmatpush1.msra.mxu0 0.0
    %207 = vmatprep.subr.mxu0 0.0
    %208 = vmatpush1.msra.mxu0 0.0
    %209 = vmatprep.subr.mxu0 0.0
    %210 = vmatpush1.msra.mxu0 0.0
    %211 = vmatprep.subr.mxu0 0.0
    %212 = vmatpush1.msra.mxu0 0.0
    %213 = vmatprep.subr.mxu0 0.0
    %214 = vmatpush1.msra.mxu0 0.0
    %215 = vmatprep.subr.mxu0 0.0
    %216 = vmatpush1.msra.mxu0 0.0
    %217 = vmatprep.subr.mxu0 0.0
    %218 = vmatpush1.msra.mxu0 0.0
    %219 = vmatprep.subr.mxu0 0.0
    %220 = vmatpush1.msra.mxu0 0.0
    %221 = vmatprep.mubr.f32.mxu0 0.0
    %222 = vmatmul.mubr.f32.gmra.mrb[0].mxu0 %v155
    %v223 = vpop.f32.mrb[0].mxu0
    %v224 = vadd.f32 %v151, %v223
    %v225 = vpop.f32.mrb[0].mxu0
    %226 = vdwg.mxu0
    %v227 = vtanh.pop %v224
    %v228 = vld [vmem:[#allocation4] sm:$0xff]
    %v229 = vld [vmem:[#allocation4 + $0x8] sm:$0xff]
    %v230 = vld [vmem:[#allocation4 + $0x10] sm:$0xff]
    %v231 = vld [vmem:[#allocation4 + $0x18] sm:$0xff]
    %v232 = vld [vmem:[%s6] sm:$0x1]
    %v234 = vlaneseq
    %v235 = vshrl.u32 %v234, 7
    %v236 = vsub.s32 0, %v235
    %v237 = vrot.slane %v232, %v236
    %v240 = vsel %vm153, %v227, 0
    %242 = vmatprep.subr.mxu0 0.0
    %243 = vmatpush1.msra.mxu0 %v228
    %244 = vmatprep.subr.mxu0 0.0
    %245 = vmatpush1.msra.mxu0 %v229
    %246 = vmatprep.subr.mxu0 0.0
    %247 = vmatpush1.msra.mxu0 %v230
    %248 = vmatprep.subr.mxu0 0.0
    %249 = vmatpush1.msra.mxu0 %v231
    %250 = vmatprep.subr.mxu0 0.0
    %251 = vmatpush1.msra.mxu0 0.0
    %252 = vmatprep.subr.mxu0 0.0
    %253 = vmatpush1.msra.mxu0 0.0
    %254 = vmatprep.subr.mxu0 0.0
    %255 = vmatpush1.msra.mxu0 0.0
    %256 = vmatprep.subr.mxu0 0.0
    %257 = vmatpush1.msra.mxu0 0.0
    %258 = vmatprep.subr.mxu0 0.0
    %259 = vmatpush1.msra.mxu0 0.0
    %260 = vmatprep.subr.mxu0 0.0
    %261 = vmatpush1.msra.mxu0 0.0
    %262 = vmatprep.subr.mxu0 0.0
    %263 = vmatpush1.msra.mxu0 0.0
    %264 = vmatprep.subr.mxu0 0.0
    %265 = vmatpush1.msra.mxu0 0.0
    %266 = vmatprep.subr.mxu0 0.0
    %267 = vmatpush1.msra.mxu0 0.0
    %268 = vmatprep.subr.mxu0 0.0
    %269 = vmatpush1.msra.mxu0 0.0
    %270 = vmatprep.subr.mxu0 0.0
    %271 = vmatpush1.msra.mxu0 0.0
    %272 = vmatprep.subr.mxu0 0.0
    %273 = vmatpush1.msra.mxu0 0.0
    %274 = vmatprep.subr.mxu0 0.0
    %275 = vmatpush1.msra.mxu0 0.0
    %276 = vmatprep.subr.mxu0 0.0
    %277 = vmatpush1.msra.mxu0 0.0
    %278 = vmatprep.subr.mxu0 0.0
    %279 = vmatpush1.msra.mxu0 0.0
    %280 = vmatprep.subr.mxu0 0.0
    %281 = vmatpush1.msra.mxu0 0.0
    %282 = vmatprep.subr.mxu0 0.0
    %283 = vmatpush1.msra.mxu0 0.0
    %284 = vmatprep.subr.mxu0 0.0
    %285 = vmatpush1.msra.mxu0 0.0
    %286 = vmatprep.subr.mxu0 0.0
    %287 = vmatpush1.msra.mxu0 0.0
    %288 = vmatprep.subr.mxu0 0.0
    %289 = vmatpush1.msra.mxu0 0.0
    %290 = vmatprep.subr.mxu0 0.0
    %291 = vmatpush1.msra.mxu0 0.0
    %292 = vmatprep.subr.mxu0 0.0
    %293 = vmatpush1.msra.mxu0 0.0
    %294 = vmatprep.subr.mxu0 0.0
    %295 = vmatpush1.msra.mxu0 0.0
    %296 = vmatprep.subr.mxu0 0.0
    %297 = vmatpush1.msra.mxu0 0.0
    %298 = vmatprep.subr.mxu0 0.0
    %299 = vmatpush1.msra.mxu0 0.0
    %300 = vmatprep.subr.mxu0 0.0
    %301 = vmatpush1.msra.mxu0 0.0
    %302 = vmatprep.subr.mxu0 0.0
    %303 = vmatpush1.msra.mxu0 0.0
    %304 = vmatprep.subr.mxu0 0.0
    %305 = vmatpush1.msra.mxu0 0.0
    %306 = vmatprep.mubr.f32.mxu0 0.0
    %307 = vmatmul.mubr.f32.gmra.mrb[0].mxu0 %v240
    %v308 = vpop.f32.mrb[0].mxu0
    %v309 = vadd.f32 %v237, %v308
    %v310 = vpop.f32.mrb[0].mxu0
    %311 = vdwg.mxu0
    %312 = vst [vmem:[%s7] sm:$0xff] %v309
    // Predicated region
    $region38: #{matrixnet_forward.1} parent=1 // pred_check
      _
    $region39: #{matrixnet_forward.1} parent=1 // pred_check_branch
      %314 = sbr.rel (0) target = $region41
    $region40: #{matrixnet_forward.1} parent=1 // pred_region
      _
    $region41: #{matrixnet_forward.1} parent=1 // pred_fallthru
      _
    // Predicated region
    $region42: #{matrixnet_forward.1} parent=1 // pred_check
      _
    $region43: #{matrixnet_forward.1} parent=1 // pred_check_branch
      %316 = sbr.rel (0) target = $region45
    $region44: #{matrixnet_forward.1} parent=1 // pred_region
      _
    $region45: #{matrixnet_forward.1} parent=1 // pred_fallthru
      _
    %317 = vsyncpa [#allocation3], 1
    %318 = vsyncpa [#allocation5], 1

</llo_original>
